<compile_context>
chip_gen: v7x
topology: tpu7x:2x2x1
jax: 0.10.0
libtpu: 0.0.40
codegen_flags: <defaults>
</compile_context>

<pallas_src>
import functools
import math

import jax
import jax.numpy as jnp
from jax.experimental import pallas as pl
from jax.experimental.pallas import tpu as pltpu


# ---------------------- generation-aware VMEM budgets ------------------------

def _vmem_capacity_bytes():
    try:
        cap = int(pltpu.get_tpu_info().vmem_capacity_bytes)
        return max(cap, 32 * 1024 * 1024)
    except Exception:
        return 64 * 1024 * 1024          # conservative fallback (v7x per-TC VMEM)


_VMEM_CAP = _vmem_capacity_bytes()
_VMEM_LIMIT = min(int(_VMEM_CAP * 0.75), 100 * 1024 * 1024)   # scoped-VMEM request per call
_TILE_BUDGET = int(_VMEM_CAP * 0.40)                          # double-buffered working-set cap


def _pick_tile(dim, target, align):
    """Largest tile <= target that is a multiple of `align` and divides `dim`;
    falls back to the full dim (a full-extent block is always legal)."""
    if dim <= target:
        return dim
    t = (target // align) * align
    while t >= align:
        if dim % t == 0:
            return t
        t -= align
    return dim


def _mm_ws(tm, tn, tk, K, itemsize=2):
    """Rough double-buffered working-set estimate for a bias matmul tile."""
    ws = 2 * (tm * tk + tk * tn + tm * tn) * itemsize + tm * tn * 4  # +f32 epilogue temp
    if tk < K:
        ws += tm * tn * 4                                            # +f32 accumulator
    return ws


def _plan_matmul_tiles(M, N, K):
    # Pass 1: prefer single-K (no accumulator scratch, fully parallel grid), biggest tm first.
    for tm_t in (1024, 512, 256, 128, 64, 32, 16, 8):
        tm = _pick_tile(M, tm_t, 8)
        for tn_t in (N, 2048, 1024, 512, 256, 128):
            tn = _pick_tile(N, tn_t, 128)
            if _mm_ws(tm, tn, K, K) <= _TILE_BUDGET:
                return tm, tn, K
    # Pass 2: tile K with an f32 accumulator (fallback for very large shapes / small VMEM).
    for tm_t in (512, 256, 128, 64, 32, 16, 8):
        tm = _pick_tile(M, tm_t, 8)
        for tn_t in (1024, 512, 256, 128):
            tn = _pick_tile(N, tn_t, 128)
            for tk_t in (1024, 512, 256, 128):
                tk = _pick_tile(K, tk_t, 128)
                if _mm_ws(tm, tn, tk, K) <= _TILE_BUDGET:
                    return tm, tn, tk
    return _pick_tile(M, 8, 8), _pick_tile(N, 128, 128), _pick_tile(K, 128, 128)


def _res_ln_ws(tm, tk, N, K, itemsize=2):
    ws = 2 * (tm * tk + tk * N + 2 * tm * N) * itemsize + tm * N * 4
    if tk < K:
        ws += tm * N * 4
    return ws


def _plan_res_ln_tiles(M, N, K):
    for tm_t in (1024, 512, 256, 128, 64, 32, 16, 8):
        tm = _pick_tile(M, tm_t, 8)
        if _res_ln_ws(tm, K, N, K) <= _TILE_BUDGET:
            return tm, K
    for tm_t in (512, 256, 128, 64, 32, 16, 8):
        tm = _pick_tile(M, tm_t, 8)
        for tk_t in (1024, 512, 256, 128):
            tk = _pick_tile(K, tk_t, 128)
            if _res_ln_ws(tm, tk, N, K) <= _TILE_BUDGET:
                return tm, tk
    return _pick_tile(M, 8, 8), _pick_tile(K, 128, 128)


# ------------------------------- activations ---------------------------------

def _erf(x):
    # Abramowitz & Stegun 7.1.26 rational approximation, |err| <= 1.5e-7 (f32, VPU+EUP only).
    a1, a2, a3, a4, a5 = 0.254829592, -0.284496736, 1.421413741, -1.453152027, 1.061405429
    p = 0.3275911
    ax = jnp.where(x >= 0.0, x, -x)
    t = 1.0 / (1.0 + p * ax)
    poly = t * (a1 + t * (a2 + t * (a3 + t * (a4 + t * a5))))
    y = 1.0 - poly * jnp.exp(-ax * ax)
    return jnp.where(x >= 0.0, y, -y)


def _gelu(y):
    # Exact (erf-based) GELU, matching HuggingFace BertModel's default hidden_act='gelu'.
    return 0.5 * y * (1.0 + _erf(y * 0.7071067811865476))


# --------------------------- projection matmul kernels ------------------------

def _matmul_1k_kernel(x_ref, w_ref, b_ref, o_ref, *, activation):
    """o = act(x @ w + b), single K step: no accumulator, no init/finalize."""
    y = jnp.dot(x_ref[...], w_ref[...], preferred_element_type=jnp.float32)
    y = y + b_ref[...].astype(jnp.float32)
    if activation == "gelu":
        y = _gelu(y)
    o_ref[...] = y.astype(o_ref.dtype)


def _matmul_acc_kernel(x_ref, w_ref, b_ref, o_ref, acc_ref, *, activation):
    """K-tiled fallback with f32 VMEM accumulator."""
    @pl.when(pl.program_id(2) == 0)
    def _():
        acc_ref[...] = jnp.zeros_like(acc_ref)

    acc_ref[...] += jnp.dot(x_ref[...], w_ref[...], preferred_element_type=jnp.float32)

    @pl.when(pl.program_id(2) == pl.num_programs(2) - 1)
    def _():
        y = acc_ref[...] + b_ref[...].astype(jnp.float32)
        if activation == "gelu":
            y = _gelu(y)
        o_ref[...] = y.astype(o_ref.dtype)


def linear(x, w, b, activation=None, out_dtype=None):
    """act(x @ w + b) with bf16 MXU operands, f32 accumulation."""
    M, K = x.shape
    N = w.shape[1]
    tm, tn, tk = _plan_matmul_tiles(M, N, K)
    bias = b.reshape(1, N)
    out_shape = jax.ShapeDtypeStruct((M, N), out_dtype or x.dtype)

    if tk == K:  # single K step: no scratch, fully parallel grid
        kernel = functools.partial(_matmul_1k_kernel, activation=activation)
        return pl.pallas_call(
            kernel,
            out_shape=out_shape,
            grid=(M // tm, N // tn),
            in_specs=[
                pl.BlockSpec((tm, K), lambda i, j: (i, 0)),
                pl.BlockSpec((K, tn), lambda i, j: (0, j)),
                pl.BlockSpec((1, tn), lambda i, j: (0, j)),
            ],
            out_specs=pl.BlockSpec((tm, tn), lambda i, j: (i, j)),
            compiler_params=pltpu.CompilerParams(
                dimension_semantics=("parallel", "parallel"),
                vmem_limit_bytes=_VMEM_LIMIT,
            ),
        )(x, w, bias)

    nk = K // tk
    w_kwargs = {"pipeline_mode": pl.Buffered(3)} if nk >= 3 else {}
    kernel = functools.partial(_matmul_acc_kernel, activation=activation)
    return pl.pallas_call(
        kernel,
        out_shape=out_shape,
        grid=(M // tm, N // tn, nk),
        in_specs=[
            pl.BlockSpec((tm, tk), lambda i, j, k: (i, k)),
            pl.BlockSpec((tk, tn), lambda i, j, k: (k, j), **w_kwargs),
            pl.BlockSpec((1, tn), lambda i, j, k: (0, j)),
        ],
        out_specs=pl.BlockSpec((tm, tn), lambda i, j, k: (i, j)),
        scratch_shapes=[pltpu.VMEM((tm, tn), jnp.float32)],
        compiler_params=pltpu.CompilerParams(
            dimension_semantics=("parallel", "parallel", "arbitrary"),
            vmem_limit_bytes=_VMEM_LIMIT,
        ),
    )(x, w, bias)


def _matmul_res_ln_1k_kernel(x_ref, w_ref, b_ref, r_ref, g_ref, bt_ref, o_ref, *, eps):
    """o = LayerNorm(x @ w + b + residual) * g + beta, single K step, full N per block."""
    y = jnp.dot(x_ref[...], w_ref[...], preferred_element_type=jnp.float32)
    y = y + b_ref[...].astype(jnp.float32) + r_ref[...].astype(jnp.float32)
    mean = jnp.mean(y, axis=-1, keepdims=True)
    yc = y - mean
    var = jnp.mean(yc * yc, axis=-1, keepdims=True)
    inv = jax.lax.rsqrt(var + eps)
    o_ref[...] = (yc * inv * g_ref[...].astype(jnp.float32)
                  + bt_ref[...].astype(jnp.float32)).astype(o_ref.dtype)


def _matmul_res_ln_acc_kernel(x_ref, w_ref, b_ref, r_ref, g_ref, bt_ref, o_ref, acc_ref, *, eps):
    """K-tiled fallback with f32 accumulator; LN in the final-K epilogue."""
    @pl.when(pl.program_id(1) == 0)
    def _():
        acc_ref[...] = jnp.zeros_like(acc_ref)

    acc_ref[...] += jnp.dot(x_ref[...], w_ref[...], preferred_element_type=jnp.float32)

    @pl.when(pl.program_id(1) == pl.num_programs(1) - 1)
    def _():
        y = acc_ref[...] + b_ref[...].astype(jnp.float32) + r_ref[...].astype(jnp.float32)
        mean = jnp.mean(y, axis=-1, keepdims=True)
        yc = y - mean
        var = jnp.mean(yc * yc, axis=-1, keepdims=True)
        inv = jax.lax.rsqrt(var + eps)
        o_ref[...] = (yc * inv * g_ref[...].astype(jnp.float32)
                      + bt_ref[...].astype(jnp.float32)).astype(o_ref.dtype)


def linear_residual_layernorm(x, w, b, residual, gamma, beta, eps=1e-12):
    M, K = x.shape
    N = w.shape[1]
    tm, tk = _plan_res_ln_tiles(M, N, K)
    args = (x, w, b.reshape(1, N), residual, gamma.reshape(1, N), beta.reshape(1, N))
    out_shape = jax.ShapeDtypeStruct((M, N), x.dtype)

    if tk == K:
        kernel = functools.partial(_matmul_res_ln_1k_kernel, eps=eps)
        return pl.pallas_call(
            kernel,
            out_shape=out_shape,
            grid=(M // tm,),
            in_specs=[
                pl.BlockSpec((tm, K), lambda i: (i, 0)),
                pl.BlockSpec((K, N), lambda i: (0, 0)),
                pl.BlockSpec((1, N), lambda i: (0, 0)),
                pl.BlockSpec((tm, N), lambda i: (i, 0)),
                pl.BlockSpec((1, N), lambda i: (0, 0)),
                pl.BlockSpec((1, N), lambda i: (0, 0)),
            ],
            out_specs=pl.BlockSpec((tm, N), lambda i: (i, 0)),
            compiler_params=pltpu.CompilerParams(
                dimension_semantics=("parallel",),
                vmem_limit_bytes=_VMEM_LIMIT,
            ),
        )(*args)

    nk = K // tk
    w_kwargs = {"pipeline_mode": pl.Buffered(3)} if nk >= 3 else {}
    kernel = functools.partial(_matmul_res_ln_acc_kernel, eps=eps)
    return pl.pallas_call(
        kernel,
        out_shape=out_shape,
        grid=(M // tm, nk),
        in_specs=[
            pl.BlockSpec((tm, tk), lambda i, k: (i, k)),
            pl.BlockSpec((tk, N), lambda i, k: (k, 0), **w_kwargs),
            pl.BlockSpec((1, N), lambda i, k: (0, 0)),
            pl.BlockSpec((tm, N), lambda i, k: (i, 0)),
            pl.BlockSpec((1, N), lambda i, k: (0, 0)),
            pl.BlockSpec((1, N), lambda i, k: (0, 0)),
        ],
        out_specs=pl.BlockSpec((tm, N), lambda i, k: (i, 0)),
        scratch_shapes=[pltpu.VMEM((tm, N), jnp.float32)],
        compiler_params=pltpu.CompilerParams(
            dimension_semantics=("parallel", "arbitrary"),
            vmem_limit_bytes=_VMEM_LIMIT,
        ),
    )(*args)


# ----------------------- fused embedding add + LayerNorm ----------------------

def _embed_ln_kernel(wd_ref, pos_ref, typ_ref, g_ref, b_ref, o_ref, *, eps):
    x = (wd_ref[...].astype(jnp.float32) + pos_ref[...].astype(jnp.float32)
         + typ_ref[...].astype(jnp.float32))
    mean = jnp.mean(x, axis=-1, keepdims=True)
    xc = x - mean
    var = jnp.mean(xc * xc, axis=-1, keepdims=True)
    inv = jax.lax.rsqrt(var + eps)
    o_ref[...] = (xc * inv * g_ref[...].astype(jnp.float32)
                  + b_ref[...].astype(jnp.float32)).astype(o_ref.dtype)


def embed_layernorm(word_gathered, pos_emb, type_row, gamma, beta, eps=1e-12,
                    out_dtype=jnp.bfloat16):
    """LayerNorm(word + pos + type) fused in one kernel (no f32 [B*S,H] HBM intermediate)."""
    B, S, H = word_gathered.shape
    ts = _pick_tile(S, 256, 8)
    kernel = functools.partial(_embed_ln_kernel, eps=eps)
    return pl.pallas_call(
        kernel,
        out_shape=jax.ShapeDtypeStruct((B, S, H), out_dtype),
        grid=(B, S // ts),
        in_specs=[
            pl.BlockSpec((None, ts, H), lambda b, s: (b, s, 0)),
            pl.BlockSpec((ts, H), lambda b, s: (s, 0)),
            pl.BlockSpec((1, H), lambda b, s: (0, 0)),
            pl.BlockSpec((1, H), lambda b, s: (0, 0)),
            pl.BlockSpec((1, H), lambda b, s: (0, 0)),
        ],
        out_specs=pl.BlockSpec((None, ts, H), lambda b, s: (b, s, 0)),
        compiler_params=pltpu.CompilerParams(
            dimension_semantics=("parallel", "parallel"),
            vmem_limit_bytes=_VMEM_LIMIT,
        ),
    )(word_gathered, pos_emb, type_row, gamma.reshape(1, H), beta.reshape(1, H))


# ----------------------------- fused attention block --------------------------

def _attn_block_kernel(x_ref, m_ref, wqkv_ref, bqkv_ref, wo_ref, bo_ref, g_ref, bt_ref,
                       o_ref, acc_ref, *, dh, scale, eps):
    """One (batch row, head) grid step of the whole attention block:
        QKV projection -> masked softmax attention -> output projection (accumulated over
        heads) -> +bias +residual -> LayerNorm, all in VMEM (no qkv/ctx HBM round trips).

    x_ref    [S, H]    bf16  projection input + residual (resident across the head axis)
    m_ref    [1, S]    f32   additive attention mask over key positions
    wqkv_ref [H, 3Dh]  bf16  this head's fused Q|K|V weights (head-major re-layout at init)
    bqkv_ref [1, 3Dh]  f32
    wo_ref   [Dh, H]   bf16  this head's rows of the output projection
    o_ref    [S, H]          written on the last head
    acc_ref  [S, H]    f32   output-projection accumulator (scratch)
    """
    h = pl.program_id(1)

    @pl.when(h == 0)
    def _():
        acc_ref[...] = jnp.zeros_like(acc_ref)

    x = x_ref[...]
    proj = jnp.dot(x, wqkv_ref[...], preferred_element_type=jnp.float32)
    proj = proj + bqkv_ref[...].astype(jnp.float32)
    q = (proj[:, :dh] * scale).astype(x.dtype)           # fold 1/sqrt(Dh) into q (S*Dh muls)
    k = proj[:, dh:2 * dh].astype(x.dtype)
    v = proj[:, 2 * dh:].astype(x.dtype)

    # scores[i, j] = q[i] . k[j]  (contract over Dh, no explicit transpose)
    s = jax.lax.dot_general(q, k, (((1,), (1,)), ((), ())),
                            preferred_element_type=jnp.float32)
    s = s + m_ref[...].astype(jnp.float32)
    s = s - jnp.max(s, axis=-1, keepdims=True)
    p = jnp.exp(s)
    p = p / jnp.sum(p, axis=-1, keepdims=True)            # exact softmax normalization
    ctx = jnp.dot(p.astype(x.dtype), v, preferred_element_type=jnp.float32)   # [S, Dh]

    # Output projection: the head axis is the contraction axis, so no head concat/transpose.
    acc_ref[...] += jnp.dot(ctx.astype(x.dtype), wo_ref[...],
                            preferred_element_type=jnp.float32)

    @pl.when(h == pl.num_programs(1) - 1)
    def _():
        y = acc_ref[...] + bo_ref[...].astype(jnp.float32) + x_ref[...].astype(jnp.float32)
        mean = jnp.mean(y, axis=-1, keepdims=True)
        yc = y - mean
        var = jnp.mean(yc * yc, axis=-1, keepdims=True)
        inv = jax.lax.rsqrt(var + eps)
        o_ref[...] = (yc * inv * g_ref[...].astype(jnp.float32)
                      + bt_ref[...].astype(jnp.float32)).astype(o_ref.dtype)


def attention_block(x, ext_mask, layer, num_heads, eps=1e-12):
    """x: [B, S, H] bf16, ext_mask: [B, 1, S] f32 -> LayerNorm(x + MHA(x)) [B, S, H] bf16."""
    B, S, H = x.shape
    dh = H // num_heads
    # TODO(synk): for long sequences (S >= ~1-2k, generation-dependent VMEM) switch to a
    # flash-style query/KV-tiled online-softmax variant instead of the full (S, S) score tile.
    kernel = functools.partial(_attn_block_kernel, dh=dh, scale=1.0 / math.sqrt(dh), eps=eps)
    return pl.pallas_call(
        kernel,
        out_shape=jax.ShapeDtypeStruct((B, S, H), x.dtype),
        grid=(B, num_heads),
        in_specs=[
            pl.BlockSpec((None, S, H), lambda b, h: (b, 0, 0)),        # x (resident over h)
            pl.BlockSpec((None, 1, S), lambda b, h: (b, 0, 0)),        # mask
            pl.BlockSpec((None, H, 3 * dh), lambda b, h: (h, 0, 0)),   # head-major QKV weights
            pl.BlockSpec((None, 1, 3 * dh), lambda b, h: (h, 0, 0)),   # head-major QKV bias
            pl.BlockSpec((None, dh, H), lambda b, h: (h, 0, 0)),       # head-major out-proj rows
            pl.BlockSpec((1, H), lambda b, h: (0, 0)),                 # out-proj bias
            pl.BlockSpec((1, H), lambda b, h: (0, 0)),                 # LN gamma
            pl.BlockSpec((1, H), lambda b, h: (0, 0)),                 # LN beta
        ],
        out_specs=pl.BlockSpec((None, S, H), lambda b, h: (b, 0, 0)),
        scratch_shapes=[pltpu.VMEM((S, H), jnp.float32)],
        compiler_params=pltpu.CompilerParams(
            dimension_semantics=("parallel", "arbitrary"),
            vmem_limit_bytes=_VMEM_LIMIT,
        ),
    )(x, ext_mask, layer["wqkv_hm"], layer["bqkv_hm"], layer["wo_hm"],
      layer["bo"].reshape(1, H), layer["ln1_g"].reshape(1, H), layer["ln1_b"].reshape(1, H))


# ------------------------------ Model (glue) ----------------------------------

def encoder_layer(x, ext_mask, p, num_heads):
    B, S, H = x.shape
    # Attention block: one fused kernel over a (batch, head) grid.
    h1 = attention_block(x, ext_mask, p, num_heads)

    h1_2d = h1.reshape(B * S, H)
    # FFN: up-projection with fused exact GELU, down-projection with fused residual + LN.
    ffn = linear(h1_2d, p["w1"], p["b1"], activation="gelu")
    h2 = linear_residual_layernorm(ffn, p["w2"], p["b2"], h1_2d, p["ln2_g"], p["ln2_b"])
    return h2.reshape(B, S, H)


def classifier_forward(params, input_ids, attn_mask, num_heads):
    """Equivalent of Classifier.forward: BERT encoder -> CLS token -> linear."""
    B, S = input_ids.shape

    # Embedding gather (glue) + fused (word + pos + type) add + LayerNorm -> bf16 activations.
    word = params["word_emb"][input_ids]                               # [B, S, H]
    x = embed_layernorm(word, params["pos_emb"][:S], params["type_emb"][0:1],
                        params["emb_ln_g"], params["emb_ln_b"])

    # Extended additive attention mask, BERT-style: (1 - mask) * -10000, shape [B, 1, S].
    ext_mask = (1.0 - attn_mask.astype(jnp.float32))[:, None, :] * -10000.0

    for layer in params["layers"]:
        x = encoder_layer(x, ext_mask, layer, num_heads)

    # Classifier head on [CLS]: tiny (B x class_num) GEMV -> plain XLA (sub-128-lane output,
    # not worth a kernel launch / masked stores).
    cls = x[:, 0, :].astype(jnp.float32)
    logits = cls @ params["cls_w"].astype(jnp.float32) + params["cls_b"]
    return logits


# --------------------------- deterministic params -----------------------------

def init_params(key, vocab, max_pos, hidden, intermediate, num_layers, num_heads, class_num):
    std = 0.02
    wdt = jnp.bfloat16  # MXU operand dtype for projection weights
    dh = hidden // num_heads

    def nrm(k, shape, dtype=jnp.float32):
        return (jax.random.normal(k, shape, jnp.float32) * std).astype(dtype)

    keys = jax.random.split(key, 6 + num_layers)
    params = {
        "word_emb": nrm(keys[0], (vocab, hidden)),
        "pos_emb": nrm(keys[1], (max_pos, hidden)),
        "type_emb": nrm(keys[2], (2, hidden)),
        "emb_ln_g": jnp.ones((hidden,), jnp.float32),
        "emb_ln_b": jnp.zeros((hidden,), jnp.float32),
        "cls_w": nrm(keys[3], (hidden, class_num)),
        "cls_b": jnp.zeros((class_num,), jnp.float32),
        "layers": [],
    }

    def heads_last(wpart):  # (H, H) standard layout -> (nh, H, dh) head-major
        return jnp.transpose(wpart.reshape(hidden, num_heads, dh), (1, 0, 2))

    for li in range(num_layers):
        lk = jax.random.split(keys[6 + li], 4)
        # Standard BERT layouts, re-laid-out head-major ONCE at init (maps 1:1 to a checkpoint):
        #   wqkv_hm[h] = [Wq_h | Wk_h | Wv_h]  (H, 3*dh);   wo_hm[h] = Wo rows of head h (dh, H).
        wqkv = nrm(lk[0], (hidden, 3 * hidden), jnp.float32)
        bqkv = jnp.zeros((3 * hidden,), jnp.float32)
        wo = nrm(lk[1], (hidden, hidden), jnp.float32)

        wq, wk, wv = jnp.split(wqkv, 3, axis=1)
        wqkv_hm = jnp.concatenate([heads_last(wq), heads_last(wk), heads_last(wv)], axis=-1)
        bq, bk, bv = jnp.split(bqkv, 3)
        bqkv_hm = jnp.concatenate([bq.reshape(num_heads, 1, dh),
                                   bk.reshape(num_heads, 1, dh),
                                   bv.reshape(num_heads, 1, dh)], axis=-1)
        wo_hm = wo.reshape(num_heads, dh, hidden)

        params["layers"].append({
            "wqkv_hm": wqkv_hm.astype(wdt),
            "bqkv_hm": bqkv_hm,
            "wo_hm": wo_hm.astype(wdt),
            "bo": jnp.zeros((hidden,), jnp.float32),
            "ln1_g": jnp.ones((hidden,), jnp.float32),
            "ln1_b": jnp.zeros((hidden,), jnp.float32),
            "w1": nrm(lk[2], (hidden, intermediate), wdt),
            "b1": jnp.zeros((intermediate,), jnp.float32),
            "w2": nrm(lk[3], (intermediate, hidden), wdt),
            "b2": jnp.zeros((hidden,), jnp.float32),
            "ln2_g": jnp.ones((hidden,), jnp.float32),
            "ln2_b": jnp.zeros((hidden,), jnp.float32),
        })
    return params


# ---------------------------------- main ---------------------------------------

if __name__ == "__main__":
    # Small synthetic config (stand-in for bert-base-uncased + 2-way head).
    B, S = 2, 8
    HIDDEN, N_HEADS, INTER = 32, 4, 64
    VOCAB, MAX_POS, N_LAYERS, CLASS_NUM = 64, 16, 2, 2

    key = jax.random.PRNGKey(0)
    k_par, k_ids = jax.random.split(key)
    params = init_params(k_par, VOCAB, MAX_POS, HIDDEN, INTER, N_LAYERS, N_HEADS, CLASS_NUM)

    input_ids = jax.random.randint(k_ids, (B, S), 0, VOCAB, dtype=jnp.int32)
    attn_mask = jnp.ones((B, S), jnp.int32).at[1, 6:].set(0)  # pad tail of example 1

    # TODO(synk): dropout layers inside BertModel are inference no-ops and are omitted;
    # pretrained-checkpoint loading / tokenization are out of scope (synthetic params).
    logits = classifier_forward(params, input_ids, attn_mask, N_HEADS)
    logits = jax.block_until_ready(logits)
    assert logits.shape == (B, CLASS_NUM) and logits.dtype == jnp.float32
    print("KERNEL_OK")
</pallas_src>

<mosaic_0001>
module attributes {stable_mosaic.version = 11 : i64} {
  func.func @_embed_ln_kernel(%arg0: i32, %arg1: i32, %arg2: memref<1x8x32xf32, #tpu.memory_space<vmem>>, %arg3: memref<8x32xf32, #tpu.memory_space<vmem>>, %arg4: memref<1x32xf32, #tpu.memory_space<vmem>>, %arg5: memref<1x32xf32, #tpu.memory_space<vmem>>, %arg6: memref<1x32xf32, #tpu.memory_space<vmem>>, %arg7: memref<1x8x32xbf16, #tpu.memory_space<vmem>>) attributes {dimension_semantics = [#tpu.dimension_semantics<parallel>, #tpu.dimension_semantics<parallel>], iteration_bounds = array<i64: 2, 1>, scalar_prefetch = 0 : i64, scratch_operands = 0 : i64, tpu.core_type = #tpu.core_type<tc>, window_params = [{transform_indices = @transform_0, window_bounds = array<i64: 1, 8, 32>}, {transform_indices = @transform_1, window_bounds = array<i64: 8, 32>}, {pipeline_mode = #tpu.pipeline_mode<synchronous>, transform_indices = @transform_2, window_bounds = array<i64: 1, 32>}, {pipeline_mode = #tpu.pipeline_mode<synchronous>, transform_indices = @transform_3, window_bounds = array<i64: 1, 32>}, {pipeline_mode = #tpu.pipeline_mode<synchronous>, transform_indices = @transform_4, window_bounds = array<i64: 1, 32>}, {transform_indices = @transform_5, window_bounds = array<i64: 1, 8, 32>}]} {
    %c0 = arith.constant 0 : index
    %c0_0 = arith.constant 0 : index
    %c0_1 = arith.constant 0 : index
    %0 = vector.load %arg2[%c0, %c0_0, %c0_1] : memref<1x8x32xf32, #tpu.memory_space<vmem>>, vector<1x8x32xf32>
    %1 = vector.shape_cast %0 : vector<1x8x32xf32> to vector<8x32xf32>
    %c0_2 = arith.constant 0 : index
    %c0_3 = arith.constant 0 : index
    %2 = vector.load %arg3[%c0_2, %c0_3] : memref<8x32xf32, #tpu.memory_space<vmem>>, vector<8x32xf32>
    %3 = arith.addf %1, %2 : vector<8x32xf32>
    %c0_4 = arith.constant 0 : index
    %c0_5 = arith.constant 0 : index
    %4 = vector.load %arg4[%c0_4, %c0_5] : memref<1x32xf32, #tpu.memory_space<vmem>>, vector<1x32xf32>
    %5 = vector.broadcast %4 : vector<1x32xf32> to vector<8x32xf32>
    %6 = arith.addf %3, %5 : vector<8x32xf32>
    %cst = arith.constant dense<0.000000e+00> : vector<8xf32>
    %7 = vector.multi_reduction <add>, %6, %cst [1] : vector<8x32xf32> to vector<8xf32>
    %8 = vector.shape_cast %7 : vector<8xf32> to vector<8x1xf32>
    %cst_6 = arith.constant 3.200000e+01 : f32
    %9 = vector.broadcast %cst_6 : f32 to vector<8x1xf32>
    %10 = arith.divf %8, %9 : vector<8x1xf32>
    %11 = vector.broadcast %10 : vector<8x1xf32> to vector<8x32xf32>
    %12 = arith.subf %6, %11 : vector<8x32xf32>
    %13 = arith.mulf %12, %12 : vector<8x32xf32>
    %cst_7 = arith.constant dense<0.000000e+00> : vector<8xf32>
    %14 = vector.multi_reduction <add>, %13, %cst_7 [1] : vector<8x32xf32> to vector<8xf32>
    %15 = vector.shape_cast %14 : vector<8xf32> to vector<8x1xf32>
    %cst_8 = arith.constant 3.200000e+01 : f32
    %16 = vector.broadcast %cst_8 : f32 to vector<8x1xf32>
    %17 = arith.divf %15, %16 : vector<8x1xf32>
    %cst_9 = arith.constant 9.99999996E-13 : f32
    %18 = vector.broadcast %cst_9 : f32 to vector<8x1xf32>
    %19 = arith.addf %17, %18 : vector<8x1xf32>
    %20 = math.rsqrt %19 : vector<8x1xf32>
    %21 = vector.broadcast %20 : vector<8x1xf32> to vector<8x32xf32>
    %22 = arith.mulf %12, %21 : vector<8x32xf32>
    %c0_10 = arith.constant 0 : index
    %c0_11 = arith.constant 0 : index
    %23 = vector.load %arg5[%c0_10, %c0_11] : memref<1x32xf32, #tpu.memory_space<vmem>>, vector<1x32xf32>
    %24 = vector.broadcast %23 : vector<1x32xf32> to vector<8x32xf32>
    %25 = arith.mulf %22, %24 : vector<8x32xf32>
    %c0_12 = arith.constant 0 : index
    %c0_13 = arith.constant 0 : index
    %26 = vector.load %arg6[%c0_12, %c0_13] : memref<1x32xf32, #tpu.memory_space<vmem>>, vector<1x32xf32>
    %27 = vector.broadcast %26 : vector<1x32xf32> to vector<8x32xf32>
    %28 = arith.addf %25, %27 : vector<8x32xf32>
    %29 = arith.truncf %28 : vector<8x32xf32> to vector<8x32xbf16>
    %c0_14 = arith.constant 0 : index
    %c0_15 = arith.constant 0 : index
    %c0_16 = arith.constant 0 : index
    %30 = vector.load %arg7[%c0_14, %c0_15, %c0_16] : memref<1x8x32xbf16, #tpu.memory_space<vmem>>, vector<1x8x32xbf16>
    %31 = vector.shape_cast %30 : vector<1x8x32xbf16> to vector<8x32xbf16>
    %32 = vector.shape_cast %29 : vector<8x32xbf16> to vector<1x8x32xbf16>
    tpu.vector_store %arg7[%c0_14, %c0_15, %c0_16], %32 {strides = array<i32>} : memref<1x8x32xbf16, #tpu.memory_space<vmem>>, vector<1x8x32xbf16>,
    return
  }
  func.func @transform_0(%arg0: i32, %arg1: i32) -> (i32, i32, i32) {
    %c0_i32 = arith.constant 0 : i32
    %c0_i32_0 = arith.constant 0 : i32
    return %arg0, %arg1, %c0_i32 : i32, i32, i32
  }
  func.func @transform_1(%arg0: i32, %arg1: i32) -> (i32, i32) {
    %c0_i32 = arith.constant 0 : i32
    %c0_i32_0 = arith.constant 0 : i32
    return %arg1, %c0_i32 : i32, i32
  }
  func.func @transform_2(%arg0: i32, %arg1: i32) -> (i32, i32) {
    %c0_i32 = arith.constant 0 : i32
    %c0_i32_0 = arith.constant 0 : i32
    %c0_i32_1 = arith.constant 0 : i32
    return %c0_i32, %c0_i32_0 : i32, i32
  }
  func.func @transform_3(%arg0: i32, %arg1: i32) -> (i32, i32) {
    %c0_i32 = arith.constant 0 : i32
    %c0_i32_0 = arith.constant 0 : i32
    %c0_i32_1 = arith.constant 0 : i32
    return %c0_i32, %c0_i32_0 : i32, i32
  }
  func.func @transform_4(%arg0: i32, %arg1: i32) -> (i32, i32) {
    %c0_i32 = arith.constant 0 : i32
    %c0_i32_0 = arith.constant 0 : i32
    %c0_i32_1 = arith.constant 0 : i32
    return %c0_i32, %c0_i32_0 : i32, i32
  }
  func.func @transform_5(%arg0: i32, %arg1: i32) -> (i32, i32, i32) {
    %c0_i32 = arith.constant 0 : i32
    %c0_i32_0 = arith.constant 0 : i32
    return %arg0, %arg1, %c0_i32 : i32, i32, i32
  }
}

</mosaic_0001>

<llo_original>
// kernel: tpu_custom_call.1
$region0: #{tpu_custom_call.1}
  #allocation0 [shape = 'u32[]', space=smem, size = 0x4, offset = 0x4, fixed_abs, tag = 'smem constant byte address 0x4 - core index']
  #allocation1 [shape = 'u32[144,128]{1,0:T(1,128)}', space=vmem, size = 0x12000, scoped, tag = 'internal scratch']
  %s0 = inlined_call_operand.hbm [shape: f32[2,8,32], index: 0, kind: input, shape index: {}]
  %s1 = inlined_call_operand.hbm [shape: f32[8,32], index: 1, kind: input, shape index: {}]
  %s2 = inlined_call_operand.vmem [shape: f32[1,32], index: 2, kind: input, shape index: {}]
  %s3 = inlined_call_operand.vmem [shape: f32[1,32], index: 3, kind: input, shape index: {}]
  %s4 = inlined_call_operand.vmem [shape: f32[1,32], index: 4, kind: input, shape index: {}]
  %s5 = inlined_call_operand.hbm [shape: bf16[2,8,32], index: 5, kind: output, shape index: {}]
  %s6 = sld [smem:[#allocation0]]
  $region61: #{tpu_custom_call.1} parent=0
    _
  %s8 = ssub.s32 1, %s6
  %s9 = scalar_select 0, %s8, %s6
  $region1: #{tpu_custom_call.1} parent=0
    #allocation2 [shape = 'u8[8192]{0}', space=vmem, size = 0x2000, scoped, tag = 'input window, operand 0']
    #allocation3 [shape = 's32[2]{0}', space=sflag, size = 0x8, scoped, tag = 'scoped memory for tpu_custom_call.1']
    #allocation4 [shape = 's32[2]{0}', space=sflag, size = 0x8, scoped, tag = 'scoped memory for tpu_custom_call.1']
    #allocation5 [shape = 'u8[4096]{0}', space=vmem, size = 0x1000, scoped, tag = 'input window, operand 1, single buffered']
    #allocation6 [shape = 's32[1]{0}', space=sflag, size = 0x4, scoped, tag = 'scoped memory for tpu_custom_call.1']
    #allocation7 [shape = 'u8[4096]{0}', space=vmem, size = 0x1000, scoped, tag = 'output window, operand 0']
    %10 = vsyncpa [#allocation3], 0
    %s11 = scalar_lea.sflag [#allocation3], 1
    %12 = vsyncpa %s11, 0
    %13 = vsyncpa [#allocation6], 0
    %14 = vsyncpa [#allocation4], 0
    %s15 = scalar_lea.sflag [#allocation4], 1
    %16 = vsyncpa %s15, 0
    loop: start=0, step=1, limit=4
    $region2: #{tpu_custom_call.1} parent=1 // loop_pre_header
      _
    $region3: #{tpu_custom_call.1} parent=1 // loop_header
      %s18 = sphi 0, %s22
      %p19 = scmp.ge.s32.totalorder %s18, 4
      %s25 = sphi 0, %s37
      %s26 = sphi 0, %s33
      %s27 = sphi 0, %s25
      %s28 = sphi 0, %s26
      %s29 = sphi 0, %s27
      %s30 = sphi 0, %s28
      %s42 = sphi 0, %s44
      %s45 = sphi 0, %s42
      %s46 = sphi 0, %s45
      %s62 = sphi 0, %s46
      %s68 = sphi 0, %s70
      %s71 = sphi 0, %s68
      %s72 = sphi 0, %s71
      %s88 = sphi 0, %s72
      %s92 = sphi 0, %s92
      %s94 = sphi 0, %s92
      %s95 = sphi 0, %s94
      %s109 = sphi 0, %s95
      %s113 = sphi 0, %s113
      %s115 = sphi 0, %s113
      %s116 = sphi 0, %s115
      %s130 = sphi 0, %s116
      %s134 = sphi 0, %s134
      %s136 = sphi 0, %s134
      %s137 = sphi 0, %s136
      %s151 = sphi 0, %s137
      %s159 = sphi 0, %s161
      %s162 = sphi 0, %s159
      %s163 = sphi 0, %s162
      %s179 = sphi 0, %s163
    $region4: #{tpu_custom_call.1} parent=1 // loop_header_branch
      %21 = sbr.rel (%p19) target = $region8
    $region5: #{tpu_custom_call.1} parent=1 // loop_body
      %s23 = ssub.s32 %s18, 1
      %s24 = ssub.s32 %s18, 2
      %s31 = sadd.s32 1, %s26
      %p32 = scmp.ge.s32.totalorder %s31, 1
      %s33 = scalar_select %p32, 0, %s31
      %s34 = sadd.s32 1, %s25
      %s35 = scalar_select %p32, %s34, %s25
      %p36 = scmp.ge.s32.totalorder %s35, 2
      %s37 = scalar_select %p36, 0, %s35
      %s38 = ssub.s32 %s25, %s37
      %s39 = ssub.s32 %s26, %s33
      %s40 = sor.u32 %s38, %s39
      %p41 = scmp.eq.s32.totalorder %s40, 0
      %s43 = sadd.s32 %s42, 1
      %s44 = scalar_select %p41, %s42, %s43
      %p47 = pneg %p41
      %p48 = scmp.eq.s32.totalorder %s18, 1
      %p49 = por %p47, %p48
      %p50 = scmp.ne.s32.totalorder %s42, %s45
      %p51 = scmp.eq.s32.totalorder %s18, 0
      %p52 = por %p50, %p51
      %p53 = scmp.ne.s32.totalorder %s42, %s45
      %p54 = scmp.eq.s32.totalorder %s23, 1
      %p55 = por %p53, %p54
      %p56 = scmp.ne.s32.totalorder %s45, %s46
      %p57 = scmp.eq.s32.totalorder %s23, 0
      %p58 = por %p56, %p57
      %p59 = scmp.ne.s32.totalorder %s45, %s46
      %p60 = scmp.eq.s32.totalorder %s24, 1
      %p61 = por %p59, %p60
      %p63 = scmp.ne.s32.totalorder %s46, %s62
      %p64 = scmp.eq.s32.totalorder %s24, 0
      %p65 = por %p63, %p64
      %s66 = ssub.s32 %s26, %s33
      %p67 = scmp.eq.s32.totalorder %s66, 0
      %s69 = sadd.s32 %s68, 1
      %s70 = scalar_select %p67, %s68, %s69
      %p73 = pneg %p67
      %p74 = scmp.eq.s32.totalorder %s18, 1
      %p75 = por %p73, %p74
      %p76 = scmp.ne.s32.totalorder %s68, %s71
      %p77 = scmp.eq.s32.totalorder %s18, 0
      %p78 = por %p76, %p77
      %p79 = scmp.ne.s32.totalorder %s68, %s71
      %p80 = scmp.eq.s32.totalorder %s23, 1
      %p81 = por %p79, %p80
      %p82 = scmp.ne.s32.totalorder %s71, %s72
      %p83 = scmp.eq.s32.totalorder %s23, 0
      %p84 = por %p82, %p83
      %p85 = scmp.ne.s32.totalorder %s71, %s72
      %p86 = scmp.eq.s32.totalorder %s24, 1
      %p87 = por %p85, %p86
      %p89 = scmp.ne.s32.totalorder %s72, %s88
      %p90 = scmp.eq.s32.totalorder %s24, 0
      %p91 = por %p89, %p90
      %s93 = sadd.s32 %s92, 1
      %p96 = scmp.eq.s32.totalorder %s18, 1
      %p97 = scmp.ne.s32.totalorder %s92, %s94
      %p98 = scmp.eq.s32.totalorder %s18, 0
      %p99 = por %p97, %p98
      %p100 = scmp.ne.s32.totalorder %s92, %s94
      %p101 = scmp.eq.s32.totalorder %s23, 1
      %p102 = por %p100, %p101
      %p103 = scmp.ne.s32.totalorder %s94, %s95
      %p104 = scmp.eq.s32.totalorder %s23, 0
      %p105 = por %p103, %p104
      %p106 = scmp.ne.s32.totalorder %s94, %s95
      %p107 = scmp.eq.s32.totalorder %s24, 1
      %p108 = por %p106, %p107
      %p110 = scmp.ne.s32.totalorder %s95, %s109
      %p111 = scmp.eq.s32.totalorder %s24, 0
      %p112 = por %p110, %p111
      %s114 = sadd.s32 %s113, 1
      %p117 = scmp.eq.s32.totalorder %s18, 1
      %p118 = scmp.ne.s32.totalorder %s113, %s115
      %p119 = scmp.eq.s32.totalorder %s18, 0
      %p120 = por %p118, %p119
      %p121 = scmp.ne.s32.totalorder %s113, %s115
      %p122 = scmp.eq.s32.totalorder %s23, 1
      %p123 = por %p121, %p122
      %p124 = scmp.ne.s32.totalorder %s115, %s116
      %p125 = scmp.eq.s32.totalorder %s23, 0
      %p126 = por %p124, %p125
      %p127 = scmp.ne.s32.totalorder %s115, %s116
      %p128 = scmp.eq.s32.totalorder %s24, 1
      %p129 = por %p127, %p128
      %p131 = scmp.ne.s32.totalorder %s116, %s130
      %p132 = scmp.eq.s32.totalorder %s24, 0
      %p133 = por %p131, %p132
      %s135 = sadd.s32 %s134, 1
      %p138 = scmp.eq.s32.totalorder %s18, 1
      %p139 = scmp.ne.s32.totalorder %s134, %s136
      %p140 = scmp.eq.s32.totalorder %s18, 0
      %p141 = por %p139, %p140
      %p142 = scmp.ne.s32.totalorder %s134, %s136
      %p143 = scmp.eq.s32.totalorder %s23, 1
      %p144 = por %p142, %p143
      %p145 = scmp.ne.s32.totalorder %s136, %s137
      %p146 = scmp.eq.s32.totalorder %s23, 0
      %p147 = por %p145, %p146
      %p148 = scmp.ne.s32.totalorder %s136, %s137
      %p149 = scmp.eq.s32.totalorder %s24, 1
      %p150 = por %p148, %p149
      %p152 = scmp.ne.s32.totalorder %s137, %s151
      %p153 = scmp.eq.s32.totalorder %s24, 0
      %p154 = por %p152, %p153
      %s155 = ssub.s32 %s25, %s37
      %s156 = ssub.s32 %s26, %s33
      %s157 = sor.u32 %s155, %s156
      %p158 = scmp.eq.s32.totalorder %s157, 0
      %s160 = sadd.s32 %s159, 1
      %s161 = scalar_select %p158, %s159, %s160
      %p164 = pneg %p158
      %p165 = scmp.eq.s32.totalorder %s18, 1
      %p166 = por %p164, %p165
      %p167 = scmp.ne.s32.totalorder %s159, %s162
      %p168 = scmp.eq.s32.totalorder %s18, 0
      %p169 = por %p167, %p168
      %p170 = scmp.ne.s32.totalorder %s159, %s162
      %p171 = scmp.eq.s32.totalorder %s23, 1
      %p172 = por %p170, %p171
      %p173 = scmp.ne.s32.totalorder %s162, %s163
      %p174 = scmp.eq.s32.totalorder %s23, 0
      %p175 = por %p173, %p174
      %p176 = scmp.ne.s32.totalorder %s162, %s163
      %p177 = scmp.eq.s32.totalorder %s24, 1
      %p178 = por %p176, %p177
      %p180 = scmp.ne.s32.totalorder %s163, %s179
      %p181 = scmp.eq.s32.totalorder %s24, 0
      %p182 = por %p180, %p181
      %p183 = scmp.le.s32.totalorder 1, %s18
      %p184 = scmp.lt.s32.totalorder %s18, 3
      %p185 = pnand %p183, %p184
      %p186 = pneg %p185
      // Predicated region
      $region9: #{tpu_custom_call.1} parent=5 // pred_check
        _
      $region10: #{tpu_custom_call.1} parent=5 // pred_check_branch
        %188 = sbr.rel (%p185) target = $region12
      $region11: #{tpu_custom_call.1} parent=5 // pred_region
        %s189 = ssub.s32 %s18, 1
        // Predicated region
        $region13: #{tpu_custom_call.1} parent=11 // pred_check
          %p190 = pneg %p84
        $region14: #{tpu_custom_call.1} parent=11 // pred_check_branch
          %192 = sbr.rel (%p190) target = $region16
        $region15: #{tpu_custom_call.1} parent=11 // pred_region
          %s194 = ssub.s32 128, 128
          %195 = vsyncadd [#allocation6], %s194
          %s196 = smul.addr %s28, 128
          %s197 = scalar_lea.hbm %s1, %s196
          %s199 = sshll.u32 [#allocation5], 4
          %s200 = int_to_ptr.vmem [resolvable:$true] %s199
          %202 = dma.hbm_to_vmem [thread:$0]  %s197, 128, %s200, [#allocation6]
        $region16: #{tpu_custom_call.1} parent=11 // pred_fallthru
          _
        // Predicated region
        $region17: #{tpu_custom_call.1} parent=11 // pred_check
          %p203 = pneg %p105
        $region18: #{tpu_custom_call.1} parent=11 // pred_check_branch
          %205 = sbr.rel (%p203) target = $region20
        $region19: #{tpu_custom_call.1} parent=11 // pred_region
          _
        $region20: #{tpu_custom_call.1} parent=11 // pred_fallthru
          _
        // Predicated region
        $region21: #{tpu_custom_call.1} parent=11 // pred_check
          %p206 = pneg %p126
        $region22: #{tpu_custom_call.1} parent=11 // pred_check_branch
          %208 = sbr.rel (%p206) target = $region24
        $region23: #{tpu_custom_call.1} parent=11 // pred_region
          _
        $region24: #{tpu_custom_call.1} parent=11 // pred_fallthru
          _
        // Predicated region
        $region25: #{tpu_custom_call.1} parent=11 // pred_check
          %p209 = pneg %p147
        $region26: #{tpu_custom_call.1} parent=11 // pred_check_branch
          %211 = sbr.rel (%p209) target = $region28
        $region27: #{tpu_custom_call.1} parent=11 // pred_region
          _
        $region28: #{tpu_custom_call.1} parent=11 // pred_fallthru
          _
      $region12: #{tpu_custom_call.1} parent=5 // pred_fallthru
        _
      %p212 = scmp.lt.s32.totalorder %s18, 2
      // Predicated region
      $region29: #{tpu_custom_call.1} parent=5 // pred_check
        %p213 = pneg %p212
      $region30: #{tpu_custom_call.1} parent=5 // pred_check_branch
        %215 = sbr.rel (%p213) target = $region32
      $region31: #{tpu_custom_call.1} parent=5 // pred_region
        // Predicated region
        $region33: #{tpu_custom_call.1} parent=31 // pred_check
          %p216 = pneg %p52
        $region34: #{tpu_custom_call.1} parent=31 // pred_check_branch
          %218 = sbr.rel (%p216) target = $region36
        $region35: #{tpu_custom_call.1} parent=31 // pred_region
          %s219 = sand.u32 %s42, 1
          %s220 = scalar_lea.sflag [#allocation3], %s219
          %s221 = sand.u32 %s42, 1
          %s222 = smul.addr %s221, 8
          %s223 = scalar_lea.vmem [#allocation2], %s222
          %s225 = ssub.s32 128, 128
          %226 = vsyncadd %s220, %s225
          %s227 = sadd.s32 %s26, %s25
          %s228 = smul.addr %s227, 128
          %s229 = scalar_lea.hbm %s0, %s228
          %s231 = sshll.u32 %s223, 4
          %s232 = int_to_ptr.vmem [resolvable:$true] %s231
          %234 = dma.hbm_to_vmem [thread:$0]  %s229, 128, %s232, %s220
        $region36: #{tpu_custom_call.1} parent=31 // pred_fallthru
          _
      $region32: #{tpu_custom_call.1} parent=5 // pred_fallthru
        _
      %p235 = scmp.le.s32.totalorder 1, %s18
      %p236 = scmp.lt.s32.totalorder %s18, 3
      %p237 = pnand %p235, %p236
      %p238 = pneg %p237
      // Predicated region
      $region37: #{tpu_custom_call.1} parent=5 // pred_check
        _
      $region38: #{tpu_custom_call.1} parent=5 // pred_check_branch
        %240 = sbr.rel (%p237) target = $region40
      $region39: #{tpu_custom_call.1} parent=5 // pred_region
        %s241 = ssub.s32 %s18, 1
        %s242 = sand.u32 %s45, 1
        %s243 = scalar_lea.sflag [#allocation3], %s242
        %s244 = sand.u32 %s45, 1
        %s245 = smul.addr %s244, 8
        %s246 = scalar_lea.vmem [#allocation2], %s245
        // Predicated region
        $region41: #{tpu_custom_call.1} parent=39 // pred_check
          %p247 = pneg %p58
        $region42: #{tpu_custom_call.1} parent=39 // pred_check_branch
          %249 = sbr.rel (%p247) target = $region44
        $region43: #{tpu_custom_call.1} parent=39 // pred_region
          %250 = dma.done %s243, 128
        $region44: #{tpu_custom_call.1} parent=39 // pred_fallthru
          _
        // Predicated region
        $region45: #{tpu_custom_call.1} parent=39 // pred_check
          %p251 = pneg %p84
        $region46: #{tpu_custom_call.1} parent=39 // pred_check_branch
          %253 = sbr.rel (%p251) target = $region48
        $region47: #{tpu_custom_call.1} parent=39 // pred_region
          %254 = dma.done [#allocation6], 128
        $region48: #{tpu_custom_call.1} parent=39 // pred_fallthru
          _
        %s255 = sand.u32 %s45, 1
        %s256 = scalar_lea.sflag [#allocation3], %s255
        %s257 = sand.u32 %s45, 1
        %s258 = smul.addr %s257, 8
        %s259 = scalar_lea.vmem [#allocation2], %s258
        %p260 = pneg %p58
        %p261 = pneg %p55
        %p262 = pneg %p84
        %p263 = pneg %p81
        %p264 = pneg %p105
        %p265 = pneg %p102
        %p266 = pneg %p126
        %p267 = pneg %p123
        %p268 = pneg %p147
        %p269 = pneg %p144
        %p270 = pneg %p175
        %p271 = pneg %p172
        %s272 = sand.u32 %s162, 1
        %s273 = scalar_lea.sflag [#allocation4], %s272
        %s274 = sand.u32 %s162, 1
        %s275 = smul.addr %s274, 4
        %s276 = scalar_lea.vmem [#allocation7], %s275
        %v277 = vld [vmem:[%s246] sm:$0xff]
        %v278 = vld [vmem:[#allocation5] sm:$0xff]
        %v279 = vadd.f32 %v277, %v278
        %v280 = vld [vmem:[%s2] sm:$0x1]
        %v282 = vlaneseq
        %v283 = vshrl.u32 %v282, 7
        %v284 = vsub.s32 0, %v283
        %v285 = vrot.slane %v280, %v284
        %v287 = vadd.f32 %v279, %v285
        %vm288 = vcmask 261120
        %v289 = vsel %vm288, %v287, 0.0
        %290 = vadd.xlane.f32.xlu0 %v289
        %v291 = vpop.xlane.xlu0 %290
        %v292 = vrcp.pop 32.0
        %v293 = vmul.f32 %v291, %v292
        %v294 = vsub.f32 %v287, %v293
        %v295 = vmul.f32 %v294, %v294
        %v296 = vsel %vm288, %v295, 0.0
        %297 = vadd.xlane.f32.xlu0 %v296
        %v298 = vpop.xlane.xlu0 %297
        %v299 = vmul.f32 %v298, %v292
        %v300 = vadd.f32 %v299, 1e-12
        %v301 = vrsqrt.pop %v300
        %v302 = vmul.f32 %v294, %v301
        %v303 = vld [vmem:[%s3] sm:$0x1]
        %v305 = vlaneseq
        %v306 = vshrl.u32 %v305, 7
        %v307 = vsub.s32 0, %v306
        %v308 = vrot.slane %v303, %v307
        %v310 = vmul.f32 %v302, %v308
        %v311 = vld [vmem:[%s4] sm:$0x1]
        %v313 = vlaneseq
        %v314 = vshrl.u32 %v313, 7
        %v315 = vsub.s32 0, %v314
        %v316 = vrot.slane %v311, %v315
        %v318 = vadd.f32 %v310, %v316
        %v319 = vpack.c.bf16 %v318, %v318
        %vm320 = vcmask 257024
        %321 = vst.msk [vmem:[%s276] sm:$0xf] %vm320, %v319
        %s322 = sand.u32 %s162, 1
        %s323 = scalar_lea.sflag [#allocation4], %s322
        %s324 = sand.u32 %s162, 1
        %s325 = smul.addr %s324, 4
        %s326 = scalar_lea.vmem [#allocation7], %s325
        // Predicated region
        $region49: #{tpu_custom_call.1} parent=39 // pred_check
          %p327 = pneg %p172
        $region50: #{tpu_custom_call.1} parent=39 // pred_check_branch
          %329 = sbr.rel (%p327) target = $region52
        $region51: #{tpu_custom_call.1} parent=39 // pred_region
          %s331 = ssub.s32 64, 64
          %332 = vsyncadd %s323, %s331
          %s333 = sadd.s32 %s28, %s27
          %s334 = smul.addr %s333, 64
          %s335 = scalar_lea.hbm %s5, %s334
          %s337 = sshll.u32 %s326, 4
          %s338 = int_to_ptr.vmem [resolvable:$true] %s337
          %340 = dma.vmem_to_hbm [thread:$0]  %s338, 64, %s335, %s323
        $region52: #{tpu_custom_call.1} parent=39 // pred_fallthru
          _
      $region40: #{tpu_custom_call.1} parent=5 // pred_fallthru
        _
      %p341 = scmp.le.s32.totalorder 2, %s18
      // Predicated region
      $region53: #{tpu_custom_call.1} parent=5 // pred_check
        %p342 = pneg %p341
      $region54: #{tpu_custom_call.1} parent=5 // pred_check_branch
        %344 = sbr.rel (%p342) target = $region56
      $region55: #{tpu_custom_call.1} parent=5 // pred_region
        %s345 = ssub.s32 %s18, 2
        // Predicated region
        $region57: #{tpu_custom_call.1} parent=55 // pred_check
          %p346 = pneg %p178
        $region58: #{tpu_custom_call.1} parent=55 // pred_check_branch
          %348 = sbr.rel (%p346) target = $region60
        $region59: #{tpu_custom_call.1} parent=55 // pred_region
          %s349 = sand.u32 %s163, 1
          %s350 = scalar_lea.sflag [#allocation4], %s349
          %s351 = sand.u32 %s163, 1
          %s352 = smul.addr %s351, 4
          %s353 = scalar_lea.vmem [#allocation7], %s352
          %354 = dma.done %s350, 64
        $region60: #{tpu_custom_call.1} parent=55 // pred_fallthru
          _
      $region56: #{tpu_custom_call.1} parent=5 // pred_fallthru
        _
    $region6: #{tpu_custom_call.1} parent=1 // loop_footer
      %s22 = sadd.s32 1, %s18
    $region7: #{tpu_custom_call.1} parent=1 // loop_footer_branch
      %17 = sbr.rel target = $region3
    $region8: #{tpu_custom_call.1} parent=1 // loop_exit
      _
    %355 = vsyncpa [#allocation3], 1
    %s356 = scalar_lea.sflag [#allocation3], 1
    %357 = vsyncpa %s356, 1
    %358 = vsyncpa [#allocation6], 1
    %359 = vsyncpa [#allocation4], 1
    %s360 = scalar_lea.sflag [#allocation4], 1
    %361 = vsyncpa %s360, 1

</llo_original>
